<compile_context>
chip_gen: v7x
topology: tpu7x:2x2x1
jax: 0.10.0
libtpu: 0.0.40
codegen_flags: <defaults>
</compile_context>

<pallas_src>
import functools
import math

import jax
import jax.numpy as jnp
from jax.experimental import pallas as pl
from jax.experimental.pallas import tpu as pltpu

_BN_EPS = 1e-5


def _round_up(x, m):
    return ((x + m - 1) // m) * m


def _vmem_limit_bytes():
    """~half of physical VMEM: 64 MiB on v5e/v6e (128 MiB), 32 MiB on v7x (64 MiB)."""
    try:
        cap = int(pltpu.get_tpu_info().vmem_capacity_bytes)
    except Exception:
        cap = 64 * 1024 * 1024          # conservative fallback (v7x per-TC size)
    return min(cap // 2, 100 * 1024 * 1024)


# ----------------------------------------------------------------------------
# Conv GEMM with fused BN-statistics epilogue.
#   A: (G, Mg_pad, Kp) f32  (cast to bf16 in-kernel)
#   B: (Kp, Np) bf16 weights
#   y: (G, Mg_pad, Np) bf16
#   psum/psumsq: (G, n_mi, 1, Np) f32 per-row-tile partials (summed in JAX)
# ----------------------------------------------------------------------------
def _gemm_stats_kernel_1k(a_ref, b_ref, y_ref, psum_ref, psumsq_ref):
    # Single K step: no f32 accumulator scratch round-trip (relieves vst slot).
    a = a_ref[0].astype(jnp.bfloat16)                         # in-kernel f32->bf16
    acc = jnp.dot(a, b_ref[...], preferred_element_type=jnp.float32)
    y_ref[0] = acc.astype(y_ref.dtype)
    psum_ref[0, 0] = jnp.sum(acc, axis=0, keepdims=True)
    psumsq_ref[0, 0] = jnp.sum(acc * acc, axis=0, keepdims=True)


def _gemm_stats_kernel(a_ref, b_ref, y_ref, psum_ref, psumsq_ref, acc_ref):
    k = pl.program_id(3)

    @pl.when(k == 0)
    def _():
        acc_ref[...] = jnp.zeros_like(acc_ref)

    a = a_ref[0].astype(jnp.bfloat16)                         # in-kernel f32->bf16
    acc_ref[...] += jnp.dot(a, b_ref[...], preferred_element_type=jnp.float32)

    @pl.when(k == pl.num_programs(3) - 1)
    def _():
        acc = acc_ref[...]
        y_ref[0] = acc.astype(y_ref.dtype)
        psum_ref[0, 0] = jnp.sum(acc, axis=0, keepdims=True)
        psumsq_ref[0, 0] = jnp.sum(acc * acc, axis=0, keepdims=True)


def conv_gemm_fused_stats(a3, wmat, *, tm=512, tn=256, tk=512, vmem_limit=None,
                          out_dtype=jnp.bfloat16):
    """a3: (G, Mg, K) f32 group-major conv input rows.  wmat: (K, Cout) f32.

    Returns (y3, sum_c, sumsq_c, TM):
      y3     : (G, Mg_pad, Np) out_dtype (padded rows are exact zeros)
      sum_c  : (G, 1, Np) f32 per-group, per-channel sums over the true Mg rows
      sumsq_c: (G, 1, Np) f32 per-group, per-channel sum of squares
    """
    if vmem_limit is None:
        vmem_limit = _vmem_limit_bytes()
    G, Mg, K = a3.shape
    K2, Cout = wmat.shape
    assert K == K2

    TM = min(tm, _round_up(Mg, 16))
    Mg_pad = _round_up(Mg, TM)
    Np = _round_up(Cout, 128)
    TN = min(tn, Np)
    if Np % TN != 0:
        TN = 128
    if K <= tk:
        TK, Kp = K, K                       # full-K block; no K padding needed
    else:
        TK = tk
        Kp = _round_up(K, TK)
    n_mi = Mg_pad // TM
    n_j = Np // TN
    n_k = Kp // TK

    if (Mg_pad, Kp) != (Mg, K):
        a3 = jnp.pad(a3, ((0, 0), (0, Mg_pad - Mg), (0, Kp - K)))
    b = wmat.astype(jnp.float32)
    if (Kp, Np) != (K, Cout):
        b = jnp.pad(b, ((0, Kp - K), (0, Np - Cout)))
    b = b.astype(jnp.bfloat16)              # weights are tiny; one-off cast is fine

    out_shapes = (jax.ShapeDtypeStruct((G, Mg_pad, Np), out_dtype),
                  jax.ShapeDtypeStruct((G, n_mi, 1, Np), jnp.float32),
                  jax.ShapeDtypeStruct((G, n_mi, 1, Np), jnp.float32))
    cost = pl.CostEstimate(
        flops=int(2 * G * Mg_pad * Np * Kp),
        transcendentals=0,
        bytes_accessed=int(G * Mg_pad * Kp * 4 + Kp * Np * 2
                           + G * Mg_pad * Np * 2 + 2 * G * n_mi * Np * 4))

    if n_k == 1:
        y3, ps, psq = pl.pallas_call(
            _gemm_stats_kernel_1k,
            out_shape=out_shapes,
            grid=(G, n_mi, n_j),
            in_specs=[
                pl.BlockSpec((1, TM, TK), lambda g, i, j: (g, i, 0)),
                pl.BlockSpec((TK, TN), lambda g, i, j: (0, j)),
            ],
            out_specs=(
                pl.BlockSpec((1, TM, TN), lambda g, i, j: (g, i, j)),
                pl.BlockSpec((1, 1, 1, TN), lambda g, i, j: (g, i, 0, j)),
                pl.BlockSpec((1, 1, 1, TN), lambda g, i, j: (g, i, 0, j)),
            ),
            compiler_params=pltpu.CompilerParams(
                dimension_semantics=("parallel", "parallel", "parallel"),
                vmem_limit_bytes=vmem_limit),
            cost_estimate=cost,
        )(a3, b)
    else:
        y3, ps, psq = pl.pallas_call(
            _gemm_stats_kernel,
            out_shape=out_shapes,
            grid=(G, n_mi, n_j, n_k),
            in_specs=[
                pl.BlockSpec((1, TM, TK), lambda g, i, j, k: (g, i, k)),
                pl.BlockSpec((TK, TN), lambda g, i, j, k: (k, j)),
            ],
            out_specs=(
                pl.BlockSpec((1, TM, TN), lambda g, i, j, k: (g, i, j)),
                pl.BlockSpec((1, 1, 1, TN), lambda g, i, j, k: (g, i, 0, j)),
                pl.BlockSpec((1, 1, 1, TN), lambda g, i, j, k: (g, i, 0, j)),
            ),
            scratch_shapes=[pltpu.VMEM((TM, TN), jnp.float32)],
            compiler_params=pltpu.CompilerParams(
                dimension_semantics=("parallel", "parallel", "parallel", "arbitrary"),
                vmem_limit_bytes=vmem_limit),
            cost_estimate=cost,
        )(a3, b)

    # Tiny cross-tile reduction of the per-row-tile partials (negligible in JAX).
    sum_c = jnp.sum(ps, axis=1)             # (G, 1, Np)
    sumsq_c = jnp.sum(psq, axis=1)          # (G, 1, Np)
    return y3, sum_c, sumsq_c, TM


# ----------------------------------------------------------------------------
# SwitchBatchNorm2d apply: y*scale + shift (+ optional ReLU) on the bf16 slab.
# ----------------------------------------------------------------------------
def _bn_apply_kernel(y_ref, scale_ref, shift_ref, o_ref, *, relu):
    y = y_ref[0].astype(jnp.float32)                   # bf16 intermediate -> f32
    out = y * scale_ref[0] + shift_ref[0]
    if relu:
        out = jnp.maximum(out, 0.0)
    o_ref[0] = out.astype(o_ref.dtype)


def bn_apply(y3, scale, shift, *, with_relu, tm, vmem_limit):
    G, Mg_pad, Np = y3.shape
    TMB = tm                                           # divides Mg_pad by construction
    # Keep the double-buffered (bf16 in + f32 out) working set within budget
    # (important on v5e where the default scoped VMEM is only 16 MiB).
    while TMB * Np * 12 > vmem_limit // 2 and TMB % 32 == 0:
        TMB //= 2
    n_m = Mg_pad // TMB
    return pl.pallas_call(
        functools.partial(_bn_apply_kernel, relu=with_relu),
        out_shape=jax.ShapeDtypeStruct((G, Mg_pad, Np), jnp.float32),
        grid=(G, n_m),
        in_specs=[
            pl.BlockSpec((1, TMB, Np), lambda g, m: (g, m, 0)),
            pl.BlockSpec((1, 1, Np), lambda g, m: (g, 0, 0)),
            pl.BlockSpec((1, 1, Np), lambda g, m: (g, 0, 0)),
        ],
        out_specs=pl.BlockSpec((1, TMB, Np), lambda g, m: (g, m, 0)),
        compiler_params=pltpu.CompilerParams(
            dimension_semantics=("parallel", "parallel"),
            vmem_limit_bytes=vmem_limit),
    )(y3, scale, shift)


# ----------------------------------------------------------------------------
# Conv glue (no padding, matches nn.Conv2d(padding=0) used by DownsampleSwitchBN)
# ----------------------------------------------------------------------------
def _conv_patches(x, kh, kw, stride):
    """x: NHWC -> patches (N, Ho, Wo, kh*kw*C). For the 1x1 downsample conv this
    is a single strided slice (no im2col blow-up)."""
    nb, H, W, C = x.shape
    Ho = (H - kh) // stride + 1
    Wo = (W - kw) // stride + 1
    taps = []
    for ki in range(kh):
        for kj in range(kw):
            taps.append(x[:, ki:ki + stride * (Ho - 1) + 1:stride,
                          kj:kj + stride * (Wo - 1) + 1:stride, :])
    if len(taps) == 1:
        patches = taps[0]
    else:
        # TODO(synk): for kh*kw > 1 this materializes the im2col matrix; folding
        # the taps into the GEMM K-reduction grid would avoid the blow-up.
        patches = jnp.concatenate(taps, axis=-1)
    return patches, Ho, Wo


def _bn_groups(switch, mode):
    if switch == 0:
        if mode == 0:
            return ('visible', 'thermal')
        if mode == 1:
            return ('visible',)
        if mode == 2:
            return ('thermal',)
        raise ValueError('invalid mode: {}'.format(mode))
    if switch == 1:
        return ('sharable',)
    raise ValueError('Invalid switch value: {}, must be 0 or 1.'.format(switch))


# ----------------------------------------------------------------------------
# DownsampleSwitchBN forward
# ----------------------------------------------------------------------------
def downsample_switch_bn_forward(params, x_nchw, mode=0, with_relu=False,
                                 eps=_BN_EPS):
    x = jnp.transpose(x_nchw, (0, 2, 3, 1)).astype(jnp.float32)   # NCHW -> NHWC
    w = params['conv_w']                                          # (Cout, Cin, kh, kw)
    Cout, Cin, kh, kw = w.shape
    stride = params['stride']
    groups = _bn_groups(params['switch'], mode)
    G = len(groups)

    nb = x.shape[0]
    assert nb % G == 0, 'batch must split evenly between visible/thermal streams'

    patches, Ho, Wo = _conv_patches(x, kh, kw, stride)            # (nb, Ho, Wo, K)
    K = kh * kw * Cin
    Mg = (nb // G) * Ho * Wo
    # group-major row order == batch-major row order, so this reshape is free.
    a3 = patches.reshape(G, Mg, K)
    wmat = jnp.transpose(w, (2, 3, 1, 0)).reshape(K, Cout)

    # NOTE: conv bias (if any) is intentionally NOT added: under training-mode
    # (batch-statistics) BN the bias is removed exactly by the per-group mean.
    # TODO(synk): eval-mode (running-stats) BN would need the bias re-added and
    # the running_mean/running_var buffers; only training-mode forward is done.

    vlim = _vmem_limit_bytes()
    y3, s, sq, tm_used = conv_gemm_fused_stats(a3, wmat, vmem_limit=vlim)
    Np = y3.shape[2]

    def pad_c(v):
        v = v.astype(jnp.float32).reshape(1, -1)
        return jnp.pad(v, ((0, 0), (0, Np - v.shape[1])))

    gamma = jnp.stack([pad_c(params['bn'][g][0]) for g in groups], axis=0)  # (G,1,Np)
    beta = jnp.stack([pad_c(params['bn'][g][1]) for g in groups], axis=0)   # (G,1,Np)

    # Per-channel BN math in f32 (biased variance == PyTorch training-mode BN).
    cnt = float(Mg)
    mean = s / cnt
    var = jnp.maximum(sq / cnt - mean * mean, 0.0)
    scale = gamma * jax.lax.rsqrt(var + eps)
    shift = beta - mean * scale

    out3 = bn_apply(y3, scale, shift, with_relu=with_relu, tm=tm_used,
                    vmem_limit=vlim)                               # (G, Mg_pad, Np) f32

    if out3.shape[1] != Mg:
        out3 = out3[:, :Mg, :]
    if out3.shape[2] != Cout:
        out3 = out3[:, :, :Cout]
    out = out3.reshape(nb, Ho, Wo, Cout)
    return jnp.transpose(out, (0, 3, 1, 2))                        # back to NCHW


# ----------------------------------------------------------------------------
# Deterministic parameter construction (mirrors DownsampleSwitchBN.__init__,
# including config.pop(0) for the SwitchBN switch).
# ----------------------------------------------------------------------------
def build_downsample_switch_bn_params(config, in_channels, out_channels,
                                      kernel_size, stride, bias, seed=0):
    key = jax.random.PRNGKey(seed)
    k_w, k_b, k_bn = jax.random.split(key, 3)
    fan_in = in_channels * kernel_size * kernel_size
    conv_w = (jax.random.normal(
        k_w, (out_channels, in_channels, kernel_size, kernel_size), jnp.float32)
        * (1.0 / math.sqrt(fan_in)))
    conv_b = (0.1 * jax.random.normal(k_b, (out_channels,), jnp.float32)
              if bias else None)

    def one_bn(k):
        kg, kb = jax.random.split(k)
        g = 1.0 + 0.1 * jax.random.normal(kg, (out_channels,), jnp.float32)
        b = 0.1 * jax.random.normal(kb, (out_channels,), jnp.float32)
        return (g, b)

    kv, kt, ks = jax.random.split(k_bn, 3)
    bn = {'visible': one_bn(kv), 'thermal': one_bn(kt), 'sharable': one_bn(ks)}
    switch = config.pop(0)       # mirrors SwitchBatchNorm2d(out_ch, config.pop(0), ...)
    return {'conv_w': conv_w, 'conv_b': conv_b, 'stride': stride,
            'bn': bn, 'switch': switch}


# ----------------------------------------------------------------------------
if __name__ == "__main__":
    in_ch, out_ch, ksize, stride, use_bias = 64, 128, 1, 2, False

    # switch = 0: dual-stream visible/thermal BN (mode 0).
    config0 = [0]
    params0 = build_downsample_switch_bn_params(
        config0, in_ch, out_ch, ksize, stride, use_bias, seed=0)
    assert len(config0) == 0

    # switch = 1: shared BN over the whole batch (exercises the G == 1 path).
    config1 = [1]
    params1 = build_downsample_switch_bn_params(
        config1, in_ch, out_ch, ksize, stride, use_bias, seed=0)

    # NCHW input; even batch so mode 0 splits 1/1 between visible/thermal streams.
    x = jax.random.normal(jax.random.PRNGKey(0), (2, in_ch, 16, 16), jnp.float32)

    fwd0 = jax.jit(lambda xx: downsample_switch_bn_forward(params0, xx, mode=0))
    fwd1 = jax.jit(lambda xx: downsample_switch_bn_forward(params1, xx, mode=0))

    out0 = jax.block_until_ready(fwd0(x))
    assert out0.shape == (2, out_ch, 8, 8), out0.shape
    assert bool(jnp.all(jnp.isfinite(out0)))

    out1 = jax.block_until_ready(fwd1(x))
    assert out1.shape == (2, out_ch, 8, 8), out1.shape
    assert bool(jnp.all(jnp.isfinite(out1)))

    # Pure-JAX f32 reference (valid for the 1x1 / stride-2 conv used here).
    w2 = params0['conv_w'][:, :, 0, 0]                                # (Cout, Cin)
    x_nhwc = jnp.transpose(x, (0, 2, 3, 1))
    xs = x_nhwc[:, ::stride, ::stride, :]
    y_ref = jnp.einsum('nhwc,oc->nhwo', xs, w2)

    def bn_ref(v, g, b):
        mu = jnp.mean(v, axis=(0, 1, 2), keepdims=True)
        var = jnp.mean((v - mu) ** 2, axis=(0, 1, 2), keepdims=True)
        return (v - mu) * jax.lax.rsqrt(var + _BN_EPS) * g + b

    bn_p = params0['bn']
    n_half = x.shape[0] // 2
    ref0 = jnp.concatenate(
        [bn_ref(y_ref[:n_half], bn_p['visible'][0], bn_p['visible'][1]),
         bn_ref(y_ref[n_half:], bn_p['thermal'][0], bn_p['thermal'][1])], axis=0)
    ref0 = jnp.transpose(ref0, (0, 3, 1, 2))
    err0 = float(jnp.max(jnp.abs(out0 - ref0)))
    assert err0 < 5e-2, 'mode0 max abs err vs f32 reference: {}'.format(err0)

    ref1 = jnp.transpose(
        bn_ref(y_ref, bn_p['sharable'][0], bn_p['sharable'][1]), (0, 3, 1, 2))
    err1 = float(jnp.max(jnp.abs(out1 - ref1)))
    assert err1 < 5e-2, 'switch1 max abs err vs f32 reference: {}'.format(err1)

    print("KERNEL_OK")
</pallas_src>

<mosaic_0001>
module attributes {stable_mosaic.version = 11 : i64} {
  func.func @_gemm_stats_kernel_1k(%arg0: i32, %arg1: i32, %arg2: i32, %arg3: memref<1x64x64xf32, #tpu.memory_space<vmem>>, %arg4: memref<64x128xbf16, #tpu.memory_space<vmem>>, %arg5: memref<1x64x128xbf16, #tpu.memory_space<vmem>>, %arg6: memref<1x1x1x128xf32, #tpu.memory_space<vmem>>, %arg7: memref<1x1x1x128xf32, #tpu.memory_space<vmem>>) attributes {dimension_semantics = [#tpu.dimension_semantics<parallel>, #tpu.dimension_semantics<parallel>, #tpu.dimension_semantics<parallel>], iteration_bounds = array<i64: 2, 1, 1>, scalar_prefetch = 0 : i64, scratch_operands = 0 : i64, tpu.core_type = #tpu.core_type<tc>, window_params = [{transform_indices = @transform_0, window_bounds = array<i64: 1, 64, 64>}, {transform_indices = @transform_1, window_bounds = array<i64: 64, 128>}, {transform_indices = @transform_2, window_bounds = array<i64: 1, 64, 128>}, {transform_indices = @transform_3, window_bounds = array<i64: 1, 1, 1, 128>}, {transform_indices = @transform_4, window_bounds = array<i64: 1, 1, 1, 128>}]} {
    %c0 = arith.constant 0 : index
    %c0_0 = arith.constant 0 : index
    %c0_1 = arith.constant 0 : index
    %0 = vector.load %arg3[%c0, %c0_0, %c0_1] : memref<1x64x64xf32, #tpu.memory_space<vmem>>, vector<1x64x64xf32>
    %1 = vector.shape_cast %0 : vector<1x64x64xf32> to vector<64x64xf32>
    %2 = arith.truncf %1 : vector<64x64xf32> to vector<64x64xbf16>
    %c0_2 = arith.constant 0 : index
    %c0_3 = arith.constant 0 : index
    %3 = vector.load %arg4[%c0_2, %c0_3] : memref<64x128xbf16, #tpu.memory_space<vmem>>, vector<64x128xbf16>
    %cst = arith.constant dense<0.000000e+00> : vector<64x128xf32>
    %4 = tpu.matmul %2, %3, %cst {dimension_numbers = #tpu.dot_dimension_numbers<[1], [0], [0], [1], [0, 0, 1, 1], [], []>} : vector<64x64xbf16>, vector<64x128xbf16>, vector<64x128xf32> -> vector<64x128xf32>
    %5 = arith.truncf %4 : vector<64x128xf32> to vector<64x128xbf16>
    %c0_4 = arith.constant 0 : index
    %c0_5 = arith.constant 0 : index
    %c0_6 = arith.constant 0 : index
    %6 = vector.load %arg5[%c0_4, %c0_5, %c0_6] : memref<1x64x128xbf16, #tpu.memory_space<vmem>>, vector<1x64x128xbf16>
    %7 = vector.shape_cast %6 : vector<1x64x128xbf16> to vector<64x128xbf16>
    %8 = vector.shape_cast %5 : vector<64x128xbf16> to vector<1x64x128xbf16>
    tpu.vector_store %arg5[%c0_4, %c0_5, %c0_6], %8 {strides = array<i32>} : memref<1x64x128xbf16, #tpu.memory_space<vmem>>, vector<1x64x128xbf16>,
    %cst_7 = arith.constant dense<0.000000e+00> : vector<128xf32>
    %9 = vector.multi_reduction <add>, %4, %cst_7 [0] : vector<64x128xf32> to vector<128xf32>
    %10 = vector.shape_cast %9 : vector<128xf32> to vector<1x128xf32>
    %c0_8 = arith.constant 0 : index
    %c0_9 = arith.constant 0 : index
    %c0_10 = arith.constant 0 : index
    %c0_11 = arith.constant 0 : index
    %11 = vector.load %arg6[%c0_8, %c0_9, %c0_10, %c0_11] : memref<1x1x1x128xf32, #tpu.memory_space<vmem>>, vector<1x1x1x128xf32>
    %12 = vector.shape_cast %11 : vector<1x1x1x128xf32> to vector<1x128xf32>
    %13 = vector.shape_cast %10 : vector<1x128xf32> to vector<1x1x1x128xf32>
    tpu.vector_store %arg6[%c0_8, %c0_9, %c0_10, %c0_11], %13 {strides = array<i32>} : memref<1x1x1x128xf32, #tpu.memory_space<vmem>>, vector<1x1x1x128xf32>,
    %14 = arith.mulf %4, %4 : vector<64x128xf32>
    %cst_12 = arith.constant dense<0.000000e+00> : vector<128xf32>
    %15 = vector.multi_reduction <add>, %14, %cst_12 [0] : vector<64x128xf32> to vector<128xf32>
    %16 = vector.shape_cast %15 : vector<128xf32> to vector<1x128xf32>
    %c0_13 = arith.constant 0 : index
    %c0_14 = arith.constant 0 : index
    %c0_15 = arith.constant 0 : index
    %c0_16 = arith.constant 0 : index
    %17 = vector.load %arg7[%c0_13, %c0_14, %c0_15, %c0_16] : memref<1x1x1x128xf32, #tpu.memory_space<vmem>>, vector<1x1x1x128xf32>
    %18 = vector.shape_cast %17 : vector<1x1x1x128xf32> to vector<1x128xf32>
    %19 = vector.shape_cast %16 : vector<1x128xf32> to vector<1x1x1x128xf32>
    tpu.vector_store %arg7[%c0_13, %c0_14, %c0_15, %c0_16], %19 {strides = array<i32>} : memref<1x1x1x128xf32, #tpu.memory_space<vmem>>, vector<1x1x1x128xf32>,
    return
  }
  func.func @transform_0(%arg0: i32, %arg1: i32, %arg2: i32) -> (i32, i32, i32) {
    %c0_i32 = arith.constant 0 : i32
    %c0_i32_0 = arith.constant 0 : i32
    return %arg0, %arg1, %c0_i32 : i32, i32, i32
  }
  func.func @transform_1(%arg0: i32, %arg1: i32, %arg2: i32) -> (i32, i32) {
    %c0_i32 = arith.constant 0 : i32
    %c0_i32_0 = arith.constant 0 : i32
    return %c0_i32, %arg2 : i32, i32
  }
  func.func @transform_2(%arg0: i32, %arg1: i32, %arg2: i32) -> (i32, i32, i32) {
    %c0_i32 = arith.constant 0 : i32
    return %arg0, %arg1, %arg2 : i32, i32, i32
  }
  func.func @transform_3(%arg0: i32, %arg1: i32, %arg2: i32) -> (i32, i32, i32, i32) {
    %c0_i32 = arith.constant 0 : i32
    %c0_i32_0 = arith.constant 0 : i32
    return %arg0, %arg1, %c0_i32, %arg2 : i32, i32, i32, i32
  }
  func.func @transform_4(%arg0: i32, %arg1: i32, %arg2: i32) -> (i32, i32, i32, i32) {
    %c0_i32 = arith.constant 0 : i32
    %c0_i32_0 = arith.constant 0 : i32
    return %arg0, %arg1, %c0_i32, %arg2 : i32, i32, i32, i32
  }
}

module attributes {stable_mosaic.version = 11 : i64} {
  func.func @_bn_apply_kernel(%arg0: i32, %arg1: i32, %arg2: memref<1x64x128xbf16, #tpu.memory_space<vmem>>, %arg3: memref<1x1x128xf32, #tpu.memory_space<vmem>>, %arg4: memref<1x1x128xf32, #tpu.memory_space<vmem>>, %arg5: memref<1x64x128xf32, #tpu.memory_space<vmem>>) attributes {dimension_semantics = [#tpu.dimension_semantics<parallel>, #tpu.dimension_semantics<parallel>], iteration_bounds = array<i64: 2, 1>, scalar_prefetch = 0 : i64, scratch_operands = 0 : i64, tpu.core_type = #tpu.core_type<tc>, window_params = [{transform_indices = @transform_0, window_bounds = array<i64: 1, 64, 128>}, {transform_indices = @transform_1, window_bounds = array<i64: 1, 1, 128>}, {transform_indices = @transform_2, window_bounds = array<i64: 1, 1, 128>}, {transform_indices = @transform_3, window_bounds = array<i64: 1, 64, 128>}]} {
    %c0 = arith.constant 0 : index
    %c0_0 = arith.constant 0 : index
    %c0_1 = arith.constant 0 : index
    %0 = vector.load %arg2[%c0, %c0_0, %c0_1] : memref<1x64x128xbf16, #tpu.memory_space<vmem>>, vector<1x64x128xbf16>
    %1 = vector.shape_cast %0 : vector<1x64x128xbf16> to vector<64x128xbf16>
    %2 = arith.extf %1 : vector<64x128xbf16> to vector<64x128xf32>
    %c0_2 = arith.constant 0 : index
    %c0_3 = arith.constant 0 : index
    %c0_4 = arith.constant 0 : index
    %3 = vector.load %arg3[%c0_2, %c0_3, %c0_4] : memref<1x1x128xf32, #tpu.memory_space<vmem>>, vector<1x1x128xf32>
    %4 = vector.shape_cast %3 : vector<1x1x128xf32> to vector<1x128xf32>
    %5 = vector.broadcast %4 : vector<1x128xf32> to vector<64x128xf32>
    %6 = arith.mulf %2, %5 : vector<64x128xf32>
    %c0_5 = arith.constant 0 : index
    %c0_6 = arith.constant 0 : index
    %c0_7 = arith.constant 0 : index
    %7 = vector.load %arg4[%c0_5, %c0_6, %c0_7] : memref<1x1x128xf32, #tpu.memory_space<vmem>>, vector<1x1x128xf32>
    %8 = vector.shape_cast %7 : vector<1x1x128xf32> to vector<1x128xf32>
    %9 = vector.broadcast %8 : vector<1x128xf32> to vector<64x128xf32>
    %10 = arith.addf %6, %9 : vector<64x128xf32>
    %c0_8 = arith.constant 0 : index
    %c0_9 = arith.constant 0 : index
    %c0_10 = arith.constant 0 : index
    %11 = vector.load %arg5[%c0_8, %c0_9, %c0_10] : memref<1x64x128xf32, #tpu.memory_space<vmem>>, vector<1x64x128xf32>
    %12 = vector.shape_cast %11 : vector<1x64x128xf32> to vector<64x128xf32>
    %13 = vector.shape_cast %10 : vector<64x128xf32> to vector<1x64x128xf32>
    tpu.vector_store %arg5[%c0_8, %c0_9, %c0_10], %13 {strides = array<i32>} : memref<1x64x128xf32, #tpu.memory_space<vmem>>, vector<1x64x128xf32>,
    return
  }
  func.func @transform_0(%arg0: i32, %arg1: i32) -> (i32, i32, i32) {
    %c0_i32 = arith.constant 0 : i32
    %c0_i32_0 = arith.constant 0 : i32
    return %arg0, %arg1, %c0_i32 : i32, i32, i32
  }
  func.func @transform_1(%arg0: i32, %arg1: i32) -> (i32, i32, i32) {
    %c0_i32 = arith.constant 0 : i32
    %c0_i32_0 = arith.constant 0 : i32
    %c0_i32_1 = arith.constant 0 : i32
    return %arg0, %c0_i32, %c0_i32_0 : i32, i32, i32
  }
  func.func @transform_2(%arg0: i32, %arg1: i32) -> (i32, i32, i32) {
    %c0_i32 = arith.constant 0 : i32
    %c0_i32_0 = arith.constant 0 : i32
    %c0_i32_1 = arith.constant 0 : i32
    return %arg0, %c0_i32, %c0_i32_0 : i32, i32, i32
  }
  func.func @transform_3(%arg0: i32, %arg1: i32) -> (i32, i32, i32) {
    %c0_i32 = arith.constant 0 : i32
    %c0_i32_0 = arith.constant 0 : i32
    return %arg0, %arg1, %c0_i32 : i32, i32, i32
  }
}

</mosaic_0001>

<llo_original>
// kernel: _lambda_.3
$region0: #{_lambda_.3}
  #allocation0 [shape = 'u32[]', space=smem, size = 0x4, offset = 0x4, fixed_abs, tag = 'smem constant byte address 0x4 - core index']
  #allocation1 [shape = 'u32[144,128]{1,0:T(1,128)}', space=vmem, size = 0x12000, scoped, tag = 'internal scratch']
  %s0 = inlined_call_operand.vmem [shape: bf16[2,64,128], index: 0, kind: input, shape index: {}]
  %s1 = inlined_call_operand.vmem [shape: f32[2,1,128], index: 1, kind: input, shape index: {}]
  %s2 = inlined_call_operand.vmem [shape: f32[2,1,128], index: 2, kind: input, shape index: {}]
  %s3 = inlined_call_operand.hbm [shape: f32[2,64,128], index: 3, kind: output, shape index: {}]
  %s4 = sld [smem:[#allocation0]]
  $region45: #{_lambda_.3} parent=0
    _
  %s6 = ssub.s32 1, %s4
  %s7 = scalar_select 0, %s6, %s4
  $region1: #{_lambda_.3} parent=0
    #allocation2 [shape = 'u8[65536]{0}', space=vmem, size = 0x10000, scoped, tag = 'output window, operand 0']
    #allocation3 [shape = 's32[2]{0}', space=sflag, size = 0x8, scoped, tag = 'scoped memory for _lambda_.3']
    %8 = vsyncpa [#allocation3], 0
    %s9 = scalar_lea.sflag [#allocation3], 1
    %10 = vsyncpa %s9, 0
    loop: start=0, step=1, limit=4
    $region2: #{_lambda_.3} parent=1 // loop_pre_header
      _
    $region3: #{_lambda_.3} parent=1 // loop_header
      %s12 = sphi 0, %s16
      %p13 = scmp.ge.s32.totalorder %s12, 4
      %s19 = sphi 0, %s31
      %s20 = sphi 0, %s27
      %s21 = sphi 0, %s19
      %s22 = sphi 0, %s20
      %s23 = sphi 0, %s21
      %s24 = sphi 0, %s22
      %s36 = sphi 0, %s38
      %s39 = sphi 0, %s36
      %s40 = sphi 0, %s39
      %s56 = sphi 0, %s40
      %s62 = sphi 0, %s64
      %s65 = sphi 0, %s62
      %s66 = sphi 0, %s65
      %s82 = sphi 0, %s66
      %s88 = sphi 0, %s90
      %s91 = sphi 0, %s88
      %s92 = sphi 0, %s91
      %s108 = sphi 0, %s92
      %s116 = sphi 0, %s118
      %s119 = sphi 0, %s116
      %s120 = sphi 0, %s119
      %s136 = sphi 0, %s120
    $region4: #{_lambda_.3} parent=1 // loop_header_branch
      %15 = sbr.rel (%p13) target = $region8
    $region5: #{_lambda_.3} parent=1 // loop_body
      %s17 = ssub.s32 %s12, 1
      %s18 = ssub.s32 %s12, 2
      %s25 = sadd.s32 1, %s20
      %p26 = scmp.ge.s32.totalorder %s25, 1
      %s27 = scalar_select %p26, 0, %s25
      %s28 = sadd.s32 1, %s19
      %s29 = scalar_select %p26, %s28, %s19
      %p30 = scmp.ge.s32.totalorder %s29, 2
      %s31 = scalar_select %p30, 0, %s29
      %s32 = ssub.s32 %s19, %s31
      %s33 = ssub.s32 %s20, %s27
      %s34 = sor.u32 %s32, %s33
      %p35 = scmp.eq.s32.totalorder %s34, 0
      %s37 = sadd.s32 %s36, 1
      %s38 = scalar_select %p35, %s36, %s37
      %p41 = pneg %p35
      %p42 = scmp.eq.s32.totalorder %s12, 1
      %p43 = por %p41, %p42
      %p44 = scmp.ne.s32.totalorder %s36, %s39
      %p45 = scmp.eq.s32.totalorder %s12, 0
      %p46 = por %p44, %p45
      %p47 = scmp.ne.s32.totalorder %s36, %s39
      %p48 = scmp.eq.s32.totalorder %s17, 1
      %p49 = por %p47, %p48
      %p50 = scmp.ne.s32.totalorder %s39, %s40
      %p51 = scmp.eq.s32.totalorder %s17, 0
      %p52 = por %p50, %p51
      %p53 = scmp.ne.s32.totalorder %s39, %s40
      %p54 = scmp.eq.s32.totalorder %s18, 1
      %p55 = por %p53, %p54
      %p57 = scmp.ne.s32.totalorder %s40, %s56
      %p58 = scmp.eq.s32.totalorder %s18, 0
      %p59 = por %p57, %p58
      %s60 = ssub.s32 %s19, %s31
      %p61 = scmp.eq.s32.totalorder %s60, 0
      %s63 = sadd.s32 %s62, 1
      %s64 = scalar_select %p61, %s62, %s63
      %p67 = pneg %p61
      %p68 = scmp.eq.s32.totalorder %s12, 1
      %p69 = por %p67, %p68
      %p70 = scmp.ne.s32.totalorder %s62, %s65
      %p71 = scmp.eq.s32.totalorder %s12, 0
      %p72 = por %p70, %p71
      %p73 = scmp.ne.s32.totalorder %s62, %s65
      %p74 = scmp.eq.s32.totalorder %s17, 1
      %p75 = por %p73, %p74
      %p76 = scmp.ne.s32.totalorder %s65, %s66
      %p77 = scmp.eq.s32.totalorder %s17, 0
      %p78 = por %p76, %p77
      %p79 = scmp.ne.s32.totalorder %s65, %s66
      %p80 = scmp.eq.s32.totalorder %s18, 1
      %p81 = por %p79, %p80
      %p83 = scmp.ne.s32.totalorder %s66, %s82
      %p84 = scmp.eq.s32.totalorder %s18, 0
      %p85 = por %p83, %p84
      %s86 = ssub.s32 %s19, %s31
      %p87 = scmp.eq.s32.totalorder %s86, 0
      %s89 = sadd.s32 %s88, 1
      %s90 = scalar_select %p87, %s88, %s89
      %p93 = pneg %p87
      %p94 = scmp.eq.s32.totalorder %s12, 1
      %p95 = por %p93, %p94
      %p96 = scmp.ne.s32.totalorder %s88, %s91
      %p97 = scmp.eq.s32.totalorder %s12, 0
      %p98 = por %p96, %p97
      %p99 = scmp.ne.s32.totalorder %s88, %s91
      %p100 = scmp.eq.s32.totalorder %s17, 1
      %p101 = por %p99, %p100
      %p102 = scmp.ne.s32.totalorder %s91, %s92
      %p103 = scmp.eq.s32.totalorder %s17, 0
      %p104 = por %p102, %p103
      %p105 = scmp.ne.s32.totalorder %s91, %s92
      %p106 = scmp.eq.s32.totalorder %s18, 1
      %p107 = por %p105, %p106
      %p109 = scmp.ne.s32.totalorder %s92, %s108
      %p110 = scmp.eq.s32.totalorder %s18, 0
      %p111 = por %p109, %p110
      %s112 = ssub.s32 %s19, %s31
      %s113 = ssub.s32 %s20, %s27
      %s114 = sor.u32 %s112, %s113
      %p115 = scmp.eq.s32.totalorder %s114, 0
      %s117 = sadd.s32 %s116, 1
      %s118 = scalar_select %p115, %s116, %s117
      %p121 = pneg %p115
      %p122 = scmp.eq.s32.totalorder %s12, 1
      %p123 = por %p121, %p122
      %p124 = scmp.ne.s32.totalorder %s116, %s119
      %p125 = scmp.eq.s32.totalorder %s12, 0
      %p126 = por %p124, %p125
      %p127 = scmp.ne.s32.totalorder %s116, %s119
      %p128 = scmp.eq.s32.totalorder %s17, 1
      %p129 = por %p127, %p128
      %p130 = scmp.ne.s32.totalorder %s119, %s120
      %p131 = scmp.eq.s32.totalorder %s17, 0
      %p132 = por %p130, %p131
      %p133 = scmp.ne.s32.totalorder %s119, %s120
      %p134 = scmp.eq.s32.totalorder %s18, 1
      %p135 = por %p133, %p134
      %p137 = scmp.ne.s32.totalorder %s120, %s136
      %p138 = scmp.eq.s32.totalorder %s18, 0
      %p139 = por %p137, %p138
      %p140 = scmp.le.s32.totalorder 1, %s12
      %p141 = scmp.lt.s32.totalorder %s12, 3
      %p142 = pnand %p140, %p141
      %p143 = pneg %p142
      // Predicated region
      $region9: #{_lambda_.3} parent=5 // pred_check
        _
      $region10: #{_lambda_.3} parent=5 // pred_check_branch
        %145 = sbr.rel (%p142) target = $region12
      $region11: #{_lambda_.3} parent=5 // pred_region
        %s146 = ssub.s32 %s12, 1
      $region12: #{_lambda_.3} parent=5 // pred_fallthru
        _
      %p147 = scmp.lt.s32.totalorder %s12, 2
      // Predicated region
      $region13: #{_lambda_.3} parent=5 // pred_check
        %p148 = pneg %p147
      $region14: #{_lambda_.3} parent=5 // pred_check_branch
        %150 = sbr.rel (%p148) target = $region16
      $region15: #{_lambda_.3} parent=5 // pred_region
        // Predicated region
        $region17: #{_lambda_.3} parent=15 // pred_check
          %p151 = pneg %p46
        $region18: #{_lambda_.3} parent=15 // pred_check_branch
          %153 = sbr.rel (%p151) target = $region20
        $region19: #{_lambda_.3} parent=15 // pred_region
          %s154 = smul.u32 8, %s20
          %p155 = scmp.lt.s32.totalorder %s19, 1
          %s156 = scalar_select %p155, %s19, 1
          %p157 = scmp.lt.s32.totalorder %s154, 7
          %s158 = scalar_select %p157, %s154, 7
          %s159 = smul.addr %s156, 8
          %s160 = sadd.s32 %s158, %s159
          %s161 = smul.addr %s160, 4
          %s162 = scalar_lea.vmem %s0, %s161
          %s163 = smul.u32 8, %s20
        $region20: #{_lambda_.3} parent=15 // pred_fallthru
          _
        // Predicated region
        $region21: #{_lambda_.3} parent=15 // pred_check
          %p164 = pneg %p72
        $region22: #{_lambda_.3} parent=15 // pred_check_branch
          %166 = sbr.rel (%p164) target = $region24
        $region23: #{_lambda_.3} parent=15 // pred_region
          %p167 = scmp.lt.s32.totalorder %s19, 1
          %s168 = scalar_select %p167, %s19, 1
          %s169 = scalar_lea.vmem %s1, %s168
        $region24: #{_lambda_.3} parent=15 // pred_fallthru
          _
        // Predicated region
        $region25: #{_lambda_.3} parent=15 // pred_check
          %p170 = pneg %p98
        $region26: #{_lambda_.3} parent=15 // pred_check_branch
          %172 = sbr.rel (%p170) target = $region28
        $region27: #{_lambda_.3} parent=15 // pred_region
          %p173 = scmp.lt.s32.totalorder %s19, 1
          %s174 = scalar_select %p173, %s19, 1
          %s175 = scalar_lea.vmem %s2, %s174
        $region28: #{_lambda_.3} parent=15 // pred_fallthru
          _
      $region16: #{_lambda_.3} parent=5 // pred_fallthru
        _
      %p176 = scmp.le.s32.totalorder 1, %s12
      %p177 = scmp.lt.s32.totalorder %s12, 3
      %p178 = pnand %p176, %p177
      %p179 = pneg %p178
      // Predicated region
      $region29: #{_lambda_.3} parent=5 // pred_check
        _
      $region30: #{_lambda_.3} parent=5 // pred_check_branch
        %181 = sbr.rel (%p178) target = $region32
      $region31: #{_lambda_.3} parent=5 // pred_region
        %s182 = ssub.s32 %s12, 1
        %s183 = smul.u32 8, %s22
        %p184 = scmp.lt.s32.totalorder %s21, 1
        %s185 = scalar_select %p184, %s21, 1
        %p186 = scmp.lt.s32.totalorder %s183, 7
        %s187 = scalar_select %p186, %s183, 7
        %s188 = smul.addr %s185, 8
        %s189 = sadd.s32 %s187, %s188
        %s190 = smul.addr %s189, 4
        %s191 = scalar_lea.vmem %s0, %s190
        %p192 = pneg %p52
        %p193 = pneg %p49
        %p194 = scmp.lt.s32.totalorder %s21, 1
        %s195 = scalar_select %p194, %s21, 1
        %s196 = scalar_lea.vmem %s1, %s195
        %p197 = pneg %p78
        %p198 = pneg %p75
        %p199 = scmp.lt.s32.totalorder %s21, 1
        %s200 = scalar_select %p199, %s21, 1
        %s201 = scalar_lea.vmem %s2, %s200
        %p202 = pneg %p104
        %p203 = pneg %p101
        %p204 = pneg %p132
        %p205 = pneg %p129
        %s206 = sand.u32 %s119, 1
        %s207 = scalar_lea.sflag [#allocation3], %s206
        %s208 = sand.u32 %s119, 1
        %s209 = smul.addr %s208, 64
        %s210 = scalar_lea.vmem [#allocation2], %s209
        %s211 = smul.u32 8, %s22
        %p212 = scmp.lt.s32.totalorder %s21, 1
        %s213 = scalar_select %p212, %s21, 1
        %p214 = scmp.lt.s32.totalorder %s211, 7
        %s215 = scalar_select %p214, %s211, 7
        %s216 = smul.addr %s213, 8
        %s217 = sadd.s32 %s215, %s216
        %s218 = smul.addr %s217, 4
        %s219 = scalar_lea.vmem %s0, %s218
        %s220 = smul.u32 8, %s22
        %p221 = scmp.lt.s32.totalorder %s21, 1
        %s222 = scalar_select %p221, %s21, 1
        %s223 = scalar_lea.vmem %s1, %s222
        %p224 = scmp.lt.s32.totalorder %s21, 1
        %s225 = scalar_select %p224, %s21, 1
        %s226 = scalar_lea.vmem %s2, %s225
        %s227 = smul.u32 8, %s22
        %v228 = vld [vmem:[%s219] sm:$0xf]
        %v229 = vld [vmem:[%s219 + $0x4] sm:$0xf]
        %v230 = vld [vmem:[%s219 + $0x8] sm:$0xf]
        %v231 = vld [vmem:[%s219 + $0xc] sm:$0xf]
        %v232 = vld [vmem:[%s219 + $0x10] sm:$0xf]
        %v233 = vld [vmem:[%s219 + $0x14] sm:$0xf]
        %v234 = vld [vmem:[%s219 + $0x18] sm:$0xf]
        %v235 = vld [vmem:[%s219 + $0x1c] sm:$0xf]
        %v236 = vunpack.c.l.bf16 %v228
        %v237 = vunpack.c.l.bf16 %v229
        %v238 = vunpack.c.l.bf16 %v230
        %v239 = vunpack.c.l.bf16 %v231
        %v240 = vunpack.c.l.bf16 %v232
        %v241 = vunpack.c.l.bf16 %v233
        %v242 = vunpack.c.l.bf16 %v234
        %v243 = vunpack.c.l.bf16 %v235
        %v244 = vld [vmem:[%s223] sm:$0x1]
        %v246 = vlaneseq
        %v247 = vshrl.u32 %v246, 7
        %v248 = vsub.s32 0, %v247
        %v249 = vrot.slane %v244, %v248
        %v251 = vmul.f32 %v236, %v249
        %v252 = vmul.f32 %v237, %v249
        %v253 = vmul.f32 %v238, %v249
        %v254 = vmul.f32 %v239, %v249
        %v255 = vmul.f32 %v240, %v249
        %v256 = vmul.f32 %v241, %v249
        %v257 = vmul.f32 %v242, %v249
        %v258 = vmul.f32 %v243, %v249
        %v259 = vld [vmem:[%s226] sm:$0x1]
        %v261 = vlaneseq
        %v262 = vshrl.u32 %v261, 7
        %v263 = vsub.s32 0, %v262
        %v264 = vrot.slane %v259, %v263
        %v266 = vadd.f32 %v251, %v264
        %v267 = vadd.f32 %v252, %v264
        %v268 = vadd.f32 %v253, %v264
        %v269 = vadd.f32 %v254, %v264
        %v270 = vadd.f32 %v255, %v264
        %v271 = vadd.f32 %v256, %v264
        %v272 = vadd.f32 %v257, %v264
        %v273 = vadd.f32 %v258, %v264
        %274 = vst [vmem:[%s210] sm:$0xff] %v266
        %275 = vst [vmem:[%s210 + $0x8] sm:$0xff] %v267
        %276 = vst [vmem:[%s210 + $0x10] sm:$0xff] %v268
        %277 = vst [vmem:[%s210 + $0x18] sm:$0xff] %v269
        %278 = vst [vmem:[%s210 + $0x20] sm:$0xff] %v270
        %279 = vst [vmem:[%s210 + $0x28] sm:$0xff] %v271
        %280 = vst [vmem:[%s210 + $0x30] sm:$0xff] %v272
        %281 = vst [vmem:[%s210 + $0x38] sm:$0xff] %v273
        %s282 = sand.u32 %s119, 1
        %s283 = scalar_lea.sflag [#allocation3], %s282
        %s284 = sand.u32 %s119, 1
        %s285 = smul.addr %s284, 64
        %s286 = scalar_lea.vmem [#allocation2], %s285
        // Predicated region
        $region33: #{_lambda_.3} parent=31 // pred_check
          %p287 = pneg %p129
        $region34: #{_lambda_.3} parent=31 // pred_check_branch
          %289 = sbr.rel (%p287) target = $region36
        $region35: #{_lambda_.3} parent=31 // pred_region
          %s290 = smul.u32 8, %s22
          %s292 = ssub.s32 1024, 1024
          %293 = vsyncadd %s283, %s292
          %s294 = smul.addr %s21, 8
          %s295 = sadd.s32 %s290, %s294
          %s296 = smul.addr %s295, 128
          %s297 = scalar_lea.hbm %s3, %s296
          %s298 = sshll.u32 %s286, 4
          %s299 = int_to_ptr.vmem [resolvable:$true] %s298
          %304 = dma.vmem_to_hbm [thread:$0]  %s299, 1024, %s297, %s283, 128, 128, 8
        $region36: #{_lambda_.3} parent=31 // pred_fallthru
          _
      $region32: #{_lambda_.3} parent=5 // pred_fallthru
        _
      %p305 = scmp.le.s32.totalorder 2, %s12
      // Predicated region
      $region37: #{_lambda_.3} parent=5 // pred_check
        %p306 = pneg %p305
      $region38: #{_lambda_.3} parent=5 // pred_check_branch
        %308 = sbr.rel (%p306) target = $region40
      $region39: #{_lambda_.3} parent=5 // pred_region
        %s309 = ssub.s32 %s12, 2
        // Predicated region
        $region41: #{_lambda_.3} parent=39 // pred_check
          %p310 = pneg %p135
        $region42: #{_lambda_.3} parent=39 // pred_check_branch
          %312 = sbr.rel (%p310) target = $region44
        $region43: #{_lambda_.3} parent=39 // pred_region
          %s313 = sand.u32 %s120, 1
          %s314 = scalar_lea.sflag [#allocation3], %s313
          %s315 = sand.u32 %s120, 1
          %s316 = smul.addr %s315, 64
          %s317 = scalar_lea.vmem [#allocation2], %s316
          %318 = dma.done %s314, 1024
        $region44: #{_lambda_.3} parent=39 // pred_fallthru
          _
      $region40: #{_lambda_.3} parent=5 // pred_fallthru
        _
    $region6: #{_lambda_.3} parent=1 // loop_footer
      %s16 = sadd.s32 1, %s12
    $region7: #{_lambda_.3} parent=1 // loop_footer_branch
      %11 = sbr.rel target = $region3
    $region8: #{_lambda_.3} parent=1 // loop_exit
      _
    %319 = vsyncpa [#allocation3], 1
    %s320 = scalar_lea.sflag [#allocation3], 1
    %321 = vsyncpa %s320, 1

// kernel: _lambda_.2
$region0: #{_lambda_.2}
  #allocation0 [shape = 'u32[]', space=smem, size = 0x4, offset = 0x4, fixed_abs, tag = 'smem constant byte address 0x4 - core index']
  #allocation1 [shape = 'u32[144,128]{1,0:T(1,128)}', space=vmem, size = 0x12000, scoped, tag = 'internal scratch']
  %s0 = inlined_call_operand.vmem [shape: f32[2,64,64], index: 0, kind: input, shape index: {}]
  %s1 = inlined_call_operand.vmem [shape: bf16[64,128], index: 1, kind: input, shape index: {}]
  %s2 = inlined_call_operand.vmem [shape: bf16[2,64,128], index: 2, kind: output, shape index: {0}]
  %s3 = inlined_call_operand.vmem [shape: f32[2,1,1,128], index: 3, kind: output, shape index: {1}]
  %s4 = inlined_call_operand.vmem [shape: f32[2,1,1,128], index: 4, kind: output, shape index: {2}]
  %5 = xla_tuple %s2, %s3, %s4
  %s6 = sld [smem:[#allocation0]]
  $region57: #{_lambda_.2} parent=0
    _
  %s8 = ssub.s32 1, %s6
  %s9 = scalar_select 0, %s8, %s6
  loop: start=0, step=1, limit=4
  $region2: #{_lambda_.2} parent=0 // loop_pre_header
    _
  $region3: #{_lambda_.2} parent=0 // loop_header
    %s11 = sphi 0, %s15
    %p12 = scmp.ge.s32.totalorder %s11, 4
    %s18 = sphi 0, %s37
    %s19 = sphi 0, %s33
    %s20 = sphi 0, %s29
    %s21 = sphi 0, %s18
    %s22 = sphi 0, %s19
    %s23 = sphi 0, %s20
    %s24 = sphi 0, %s21
    %s25 = sphi 0, %s22
    %s26 = sphi 0, %s23
    %s42 = sphi 0, %s44
    %s45 = sphi 0, %s42
    %s46 = sphi 0, %s45
    %s62 = sphi 0, %s46
    %s68 = sphi 0, %s70
    %s71 = sphi 0, %s68
    %s72 = sphi 0, %s71
    %s88 = sphi 0, %s72
    %s98 = sphi 0, %s100
    %s101 = sphi 0, %s98
    %s102 = sphi 0, %s101
    %s118 = sphi 0, %s102
    %s128 = sphi 0, %s130
    %s131 = sphi 0, %s128
    %s132 = sphi 0, %s131
    %s148 = sphi 0, %s132
    %s158 = sphi 0, %s160
    %s161 = sphi 0, %s158
    %s162 = sphi 0, %s161
    %s178 = sphi 0, %s162
  $region4: #{_lambda_.2} parent=0 // loop_header_branch
    %14 = sbr.rel (%p12) target = $region8
  $region5: #{_lambda_.2} parent=0 // loop_body
    %s16 = ssub.s32 %s11, 1
    %s17 = ssub.s32 %s11, 2
    %s27 = sadd.s32 1, %s20
    %p28 = scmp.ge.s32.totalorder %s27, 1
    %s29 = scalar_select %p28, 0, %s27
    %s30 = sadd.s32 1, %s19
    %s31 = scalar_select %p28, %s30, %s19
    %p32 = scmp.ge.s32.totalorder %s31, 1
    %s33 = scalar_select %p32, 0, %s31
    %s34 = sadd.s32 1, %s18
    %s35 = scalar_select %p32, %s34, %s18
    %p36 = scmp.ge.s32.totalorder %s35, 2
    %s37 = scalar_select %p36, 0, %s35
    %s38 = ssub.s32 %s18, %s37
    %s39 = ssub.s32 %s19, %s33
    %s40 = sor.u32 %s38, %s39
    %p41 = scmp.eq.s32.totalorder %s40, 0
    %s43 = sadd.s32 %s42, 1
    %s44 = scalar_select %p41, %s42, %s43
    %p47 = pneg %p41
    %p48 = scmp.eq.s32.totalorder %s11, 1
    %p49 = por %p47, %p48
    %p50 = scmp.ne.s32.totalorder %s42, %s45
    %p51 = scmp.eq.s32.totalorder %s11, 0
    %p52 = por %p50, %p51
    %p53 = scmp.ne.s32.totalorder %s42, %s45
    %p54 = scmp.eq.s32.totalorder %s16, 1
    %p55 = por %p53, %p54
    %p56 = scmp.ne.s32.totalorder %s45, %s46
    %p57 = scmp.eq.s32.totalorder %s16, 0
    %p58 = por %p56, %p57
    %p59 = scmp.ne.s32.totalorder %s45, %s46
    %p60 = scmp.eq.s32.totalorder %s17, 1
    %p61 = por %p59, %p60
    %p63 = scmp.ne.s32.totalorder %s46, %s62
    %p64 = scmp.eq.s32.totalorder %s17, 0
    %p65 = por %p63, %p64
    %s66 = ssub.s32 %s20, %s29
    %p67 = scmp.eq.s32.totalorder %s66, 0
    %s69 = sadd.s32 %s68, 1
    %s70 = scalar_select %p67, %s68, %s69
    %p73 = pneg %p67
    %p74 = scmp.eq.s32.totalorder %s11, 1
    %p75 = por %p73, %p74
    %p76 = scmp.ne.s32.totalorder %s68, %s71
    %p77 = scmp.eq.s32.totalorder %s11, 0
    %p78 = por %p76, %p77
    %p79 = scmp.ne.s32.totalorder %s68, %s71
    %p80 = scmp.eq.s32.totalorder %s16, 1
    %p81 = por %p79, %p80
    %p82 = scmp.ne.s32.totalorder %s71, %s72
    %p83 = scmp.eq.s32.totalorder %s16, 0
    %p84 = por %p82, %p83
    %p85 = scmp.ne.s32.totalorder %s71, %s72
    %p86 = scmp.eq.s32.totalorder %s17, 1
    %p87 = por %p85, %p86
    %p89 = scmp.ne.s32.totalorder %s72, %s88
    %p90 = scmp.eq.s32.totalorder %s17, 0
    %p91 = por %p89, %p90
    %s92 = ssub.s32 %s18, %s37
    %s93 = ssub.s32 %s19, %s33
    %s94 = sor.u32 %s92, %s93
    %s95 = ssub.s32 %s20, %s29
    %s96 = sor.u32 %s94, %s95
    %p97 = scmp.eq.s32.totalorder %s96, 0
    %s99 = sadd.s32 %s98, 1
    %s100 = scalar_select %p97, %s98, %s99
    %p103 = pneg %p97
    %p104 = scmp.eq.s32.totalorder %s11, 1
    %p105 = por %p103, %p104
    %p106 = scmp.ne.s32.totalorder %s98, %s101
    %p107 = scmp.eq.s32.totalorder %s11, 0
    %p108 = por %p106, %p107
    %p109 = scmp.ne.s32.totalorder %s98, %s101
    %p110 = scmp.eq.s32.totalorder %s16, 1
    %p111 = por %p109, %p110
    %p112 = scmp.ne.s32.totalorder %s101, %s102
    %p113 = scmp.eq.s32.totalorder %s16, 0
    %p114 = por %p112, %p113
    %p115 = scmp.ne.s32.totalorder %s101, %s102
    %p116 = scmp.eq.s32.totalorder %s17, 1
    %p117 = por %p115, %p116
    %p119 = scmp.ne.s32.totalorder %s102, %s118
    %p120 = scmp.eq.s32.totalorder %s17, 0
    %p121 = por %p119, %p120
    %s122 = ssub.s32 %s18, %s37
    %s123 = ssub.s32 %s19, %s33
    %s124 = sor.u32 %s122, %s123
    %s125 = ssub.s32 %s20, %s29
    %s126 = sor.u32 %s124, %s125
    %p127 = scmp.eq.s32.totalorder %s126, 0
    %s129 = sadd.s32 %s128, 1
    %s130 = scalar_select %p127, %s128, %s129
    %p133 = pneg %p127
    %p134 = scmp.eq.s32.totalorder %s11, 1
    %p135 = por %p133, %p134
    %p136 = scmp.ne.s32.totalorder %s128, %s131
    %p137 = scmp.eq.s32.totalorder %s11, 0
    %p138 = por %p136, %p137
    %p139 = scmp.ne.s32.totalorder %s128, %s131
    %p140 = scmp.eq.s32.totalorder %s16, 1
    %p141 = por %p139, %p140
    %p142 = scmp.ne.s32.totalorder %s131, %s132
    %p143 = scmp.eq.s32.totalorder %s16, 0
    %p144 = por %p142, %p143
    %p145 = scmp.ne.s32.totalorder %s131, %s132
    %p146 = scmp.eq.s32.totalorder %s17, 1
    %p147 = por %p145, %p146
    %p149 = scmp.ne.s32.totalorder %s132, %s148
    %p150 = scmp.eq.s32.totalorder %s17, 0
    %p151 = por %p149, %p150
    %s152 = ssub.s32 %s18, %s37
    %s153 = ssub.s32 %s19, %s33
    %s154 = sor.u32 %s152, %s153
    %s155 = ssub.s32 %s20, %s29
    %s156 = sor.u32 %s154, %s155
    %p157 = scmp.eq.s32.totalorder %s156, 0
    %s159 = sadd.s32 %s158, 1
    %s160 = scalar_select %p157, %s158, %s159
    %p163 = pneg %p157
    %p164 = scmp.eq.s32.totalorder %s11, 1
    %p165 = por %p163, %p164
    %p166 = scmp.ne.s32.totalorder %s158, %s161
    %p167 = scmp.eq.s32.totalorder %s11, 0
    %p168 = por %p166, %p167
    %p169 = scmp.ne.s32.totalorder %s158, %s161
    %p170 = scmp.eq.s32.totalorder %s16, 1
    %p171 = por %p169, %p170
    %p172 = scmp.ne.s32.totalorder %s161, %s162
    %p173 = scmp.eq.s32.totalorder %s16, 0
    %p174 = por %p172, %p173
    %p175 = scmp.ne.s32.totalorder %s161, %s162
    %p176 = scmp.eq.s32.totalorder %s17, 1
    %p177 = por %p175, %p176
    %p179 = scmp.ne.s32.totalorder %s162, %s178
    %p180 = scmp.eq.s32.totalorder %s17, 0
    %p181 = por %p179, %p180
    %p182 = scmp.le.s32.totalorder 1, %s11
    %p183 = scmp.lt.s32.totalorder %s11, 3
    %p184 = pnand %p182, %p183
    %p185 = pneg %p184
    // Predicated region
    $region9: #{_lambda_.2} parent=5 // pred_check
      _
    $region10: #{_lambda_.2} parent=5 // pred_check_branch
      %187 = sbr.rel (%p184) target = $region12
    $region11: #{_lambda_.2} parent=5 // pred_region
      %s188 = ssub.s32 %s11, 1
      // Predicated region
      $region13: #{_lambda_.2} parent=11 // pred_check
        %p189 = pneg %p84
      $region14: #{_lambda_.2} parent=11 // pred_check_branch
        %191 = sbr.rel (%p189) target = $region16
      $region15: #{_lambda_.2} parent=11 // pred_region
        %p192 = scmp.lt.s32.totalorder %s23, 0
        %s193 = scalar_select %p192, %s23, 0
        %s194 = smul.addr %s193, 4
        %s195 = scalar_lea.vmem %s1, %s194
      $region16: #{_lambda_.2} parent=11 // pred_fallthru
        _
    $region12: #{_lambda_.2} parent=5 // pred_fallthru
      _
    %p196 = scmp.lt.s32.totalorder %s11, 2
    // Predicated region
    $region17: #{_lambda_.2} parent=5 // pred_check
      %p197 = pneg %p196
    $region18: #{_lambda_.2} parent=5 // pred_check_branch
      %199 = sbr.rel (%p197) target = $region20
    $region19: #{_lambda_.2} parent=5 // pred_region
      // Predicated region
      $region21: #{_lambda_.2} parent=19 // pred_check
        %p200 = pneg %p52
      $region22: #{_lambda_.2} parent=19 // pred_check_branch
        %202 = sbr.rel (%p200) target = $region24
      $region23: #{_lambda_.2} parent=19 // pred_region
        %s203 = smul.u32 8, %s19
        %p204 = scmp.lt.s32.totalorder %s18, 1
        %s205 = scalar_select %p204, %s18, 1
        %p206 = scmp.lt.s32.totalorder %s203, 7
        %s207 = scalar_select %p206, %s203, 7
        %s208 = smul.addr %s205, 8
        %s209 = sadd.s32 %s207, %s208
        %s210 = smul.addr %s209, 8
        %s211 = scalar_lea.vmem %s0, %s210
        %s212 = smul.u32 8, %s19
      $region24: #{_lambda_.2} parent=19 // pred_fallthru
        _
    $region20: #{_lambda_.2} parent=5 // pred_fallthru
      _
    %p213 = scmp.le.s32.totalorder 1, %s11
    %p214 = scmp.lt.s32.totalorder %s11, 3
    %p215 = pnand %p213, %p214
    %p216 = pneg %p215
    // Predicated region
    $region25: #{_lambda_.2} parent=5 // pred_check
      _
    $region26: #{_lambda_.2} parent=5 // pred_check_branch
      %218 = sbr.rel (%p215) target = $region28
    $region27: #{_lambda_.2} parent=5 // pred_region
      %s219 = ssub.s32 %s11, 1
      %s220 = smul.u32 8, %s22
      %p221 = scmp.lt.s32.totalorder %s21, 1
      %s222 = scalar_select %p221, %s21, 1
      %p223 = scmp.lt.s32.totalorder %s220, 7
      %s224 = scalar_select %p223, %s220, 7
      %s225 = smul.addr %s222, 8
      %s226 = sadd.s32 %s224, %s225
      %s227 = smul.addr %s226, 8
      %s228 = scalar_lea.vmem %s0, %s227
      %p229 = pneg %p58
      %p230 = pneg %p55
      %p231 = scmp.lt.s32.totalorder %s23, 0
      %s232 = scalar_select %p231, %s23, 0
      %s233 = smul.addr %s232, 4
      %s234 = scalar_lea.vmem %s1, %s233
      %p235 = pneg %p84
      %p236 = pneg %p81
      %p237 = pneg %p114
      %p238 = pneg %p111
      %s239 = smul.u32 8, %s22
      %p240 = scmp.lt.s32.totalorder %s21, 1
      %s241 = scalar_select %p240, %s21, 1
      %p242 = scmp.lt.s32.totalorder %s239, 7
      %s243 = scalar_select %p242, %s239, 7
      %p244 = scmp.lt.s32.totalorder %s23, 0
      %s245 = scalar_select %p244, %s23, 0
      %s246 = sadd.s32 %s245, %s243
      %s247 = smul.addr %s241, 8
      %s248 = sadd.s32 %s246, %s247
      %s249 = smul.addr %s248, 4
      %s250 = scalar_lea.vmem %s2, %s249
      %p251 = pneg %p144
      %p252 = pneg %p141
      %p253 = scmp.lt.s32.totalorder %s21, 1
      %s254 = scalar_select %p253, %s21, 1
      %p255 = scmp.lt.s32.totalorder %s22, 0
      %s256 = scalar_select %p255, %s22, 0
      %p257 = scmp.lt.s32.totalorder %s23, 0
      %s258 = scalar_select %p257, %s23, 0
      %s259 = sadd.s32 %s258, %s256
      %s260 = sadd.s32 %s259, %s254
      %s261 = scalar_lea.vmem %s3, %s260
      %p262 = pneg %p174
      %p263 = pneg %p171
      %p264 = scmp.lt.s32.totalorder %s21, 1
      %s265 = scalar_select %p264, %s21, 1
      %p266 = scmp.lt.s32.totalorder %s22, 0
      %s267 = scalar_select %p266, %s22, 0
      %p268 = scmp.lt.s32.totalorder %s23, 0
      %s269 = scalar_select %p268, %s23, 0
      %s270 = sadd.s32 %s269, %s267
      %s271 = sadd.s32 %s270, %s265
      %s272 = scalar_lea.vmem %s4, %s271
      %s273 = smul.u32 8, %s22
      %p274 = scmp.lt.s32.totalorder %s21, 1
      %s275 = scalar_select %p274, %s21, 1
      %p276 = scmp.lt.s32.totalorder %s273, 7
      %s277 = scalar_select %p276, %s273, 7
      %s278 = smul.addr %s275, 8
      %s279 = sadd.s32 %s277, %s278
      %s280 = smul.addr %s279, 8
      %s281 = scalar_lea.vmem %s0, %s280
      %s282 = smul.u32 8, %s22
      %p283 = scmp.lt.s32.totalorder %s23, 0
      %s284 = scalar_select %p283, %s23, 0
      %s285 = smul.addr %s284, 4
      %s286 = scalar_lea.vmem %s1, %s285
      %s287 = smul.u32 8, %s22
      %p288 = scmp.lt.s32.totalorder %s21, 1
      %s289 = scalar_select %p288, %s21, 1
      %p290 = scmp.lt.s32.totalorder %s287, 7
      %s291 = scalar_select %p290, %s287, 7
      %p292 = scmp.lt.s32.totalorder %s23, 0
      %s293 = scalar_select %p292, %s23, 0
      %s294 = sadd.s32 %s293, %s291
      %s295 = smul.addr %s289, 8
      %s296 = sadd.s32 %s294, %s295
      %s297 = smul.addr %s296, 4
      %s298 = scalar_lea.vmem %s2, %s297
      %s299 = smul.u32 8, %s22
      %p300 = scmp.lt.s32.totalorder %s21, 1
      %s301 = scalar_select %p300, %s21, 1
      %p302 = scmp.lt.s32.totalorder %s22, 0
      %s303 = scalar_select %p302, %s22, 0
      %p304 = scmp.lt.s32.totalorder %s23, 0
      %s305 = scalar_select %p304, %s23, 0
      %s306 = sadd.s32 %s305, %s303
      %s307 = sadd.s32 %s306, %s301
      %s308 = scalar_lea.vmem %s3, %s307
      %p309 = scmp.lt.s32.totalorder %s21, 1
      %s310 = scalar_select %p309, %s21, 1
      %p311 = scmp.lt.s32.totalorder %s22, 0
      %s312 = scalar_select %p311, %s22, 0
      %p313 = scmp.lt.s32.totalorder %s23, 0
      %s314 = scalar_select %p313, %s23, 0
      %s315 = sadd.s32 %s314, %s312
      %s316 = sadd.s32 %s315, %s310
      %s317 = scalar_lea.vmem %s4, %s316
      %v319 = vld [vmem:[%s281] sm:$0xff]
      %v320 = vld [vmem:[%s281 + $0x8] sm:$0xff]
      %v321 = vld [vmem:[%s281 + $0x10] sm:$0xff]
      %v322 = vld [vmem:[%s281 + $0x18] sm:$0xff]
      %v323 = vld [vmem:[%s281 + $0x20] sm:$0xff]
      %v324 = vld [vmem:[%s281 + $0x28] sm:$0xff]
      %v325 = vld [vmem:[%s281 + $0x30] sm:$0xff]
      %v326 = vld [vmem:[%s281 + $0x38] sm:$0xff]
      %v327 = vpack.c.bf16 %v320, %v319
      %v328 = vpack.c.bf16 %v322, %v321
      %v329 = vpack.c.bf16 %v324, %v323
      %v330 = vpack.c.bf16 %v326, %v325
      %v331 = vld [vmem:[%s286] sm:$0xf]
      %v332 = vld [vmem:[%s286 + $0x4] sm:$0xf]
      %v333 = vld [vmem:[%s286 + $0x8] sm:$0xf]
      %v334 = vld [vmem:[%s286 + $0xc] sm:$0xf]
      %v335 = vld [vmem:[%s286 + $0x10] sm:$0xf]
      %v336 = vld [vmem:[%s286 + $0x14] sm:$0xf]
      %v337 = vld [vmem:[%s286 + $0x18] sm:$0xf]
      %v338 = vld [vmem:[%s286 + $0x1c] sm:$0xf]
      %v347 = vunpack.c.l.b16 %v331
      %v348 = vunpack.c.l.b16 %v332
      %v349 = vunpack.c.l.b16 %v333
      %v350 = vunpack.c.l.b16 %v334
      %v351 = vunpack.c.l.b16 %v335
      %v352 = vunpack.c.l.b16 %v336
      %v353 = vunpack.c.l.b16 %v337
      %v354 = vunpack.c.l.b16 %v338
      %v355 = vpack.c.b16 %v348, %v347
      %v356 = vpack.c.b16 %v350, %v349
      %v357 = vpack.c.b16 %v352, %v351
      %v358 = vpack.c.b16 %v354, %v353
      %vm363 = vcmask 523264
      %v365 = vsel %vm363, %v327, 0
      %v368 = vsel %vm363, %v328, 0
      %v371 = vsel %vm363, %v329, 0
      %v374 = vsel %vm363, %v330, 0
      %376 = vmatprep.subr.bf16.mxu0 0
      %377 = vmatpush1.bf16.msra.mxu0 %v355
      %378 = vmatprep.subr.bf16.mxu0 0
      %379 = vmatpush1.bf16.msra.mxu0 %v356
      %380 = vmatprep.subr.bf16.mxu0 0
      %381 = vmatpush1.bf16.msra.mxu0 %v357
      %382 = vmatprep.subr.bf16.mxu0 0
      %383 = vmatpush1.bf16.msra.mxu0 %v358
      %384 = vmatprep.subr.bf16.mxu0 0
      %385 = vmatpush1.bf16.msra.mxu0 0
      %386 = vmatprep.subr.bf16.mxu0 0
      %387 = vmatpush1.bf16.msra.mxu0 0
      %388 = vmatprep.subr.bf16.mxu0 0
      %389 = vmatpush1.bf16.msra.mxu0 0
      %390 = vmatprep.subr.bf16.mxu0 0
      %391 = vmatpush1.bf16.msra.mxu0 0
      %392 = vmatprep.subr.bf16.mxu0 0
      %393 = vmatpush1.bf16.msra.mxu0 0
      %394 = vmatprep.subr.bf16.mxu0 0
      %395 = vmatpush1.bf16.msra.mxu0 0
      %396 = vmatprep.subr.bf16.mxu0 0
      %397 = vmatpush1.bf16.msra.mxu0 0
      %398 = vmatprep.subr.bf16.mxu0 0
      %399 = vmatpush1.bf16.msra.mxu0 0
      %400 = vmatprep.subr.bf16.mxu0 0
      %401 = vmatpush1.bf16.msra.mxu0 0
      %402 = vmatprep.subr.bf16.mxu0 0
      %403 = vmatpush1.bf16.msra.mxu0 0
      %404 = vmatprep.subr.bf16.mxu0 0
      %405 = vmatpush1.bf16.msra.mxu0 0
      %406 = vmatprep.subr.bf16.mxu0 0
      %407 = vmatpush1.bf16.msra.mxu0 0
      %408 = vmatprep.mubr.bf16.mxu0 0
      %409 = vmatmul.mubr.bf16.gmra.mrb[0].mxu0 %v365
      %v410 = vpop.f32.mrb[0].mxu0
      %v411 = vadd.f32 0.0, %v410
      %v412 = vpop.f32.mrb[0].mxu0
      %v413 = vpop.f32.mrb[0].mxu0
      %v414 = vadd.f32 0.0, %v413
      %v415 = vpop.f32.mrb[0].mxu0
      %416 = vmatprep.mubr.bf16.mxu0 0
      %417 = vmatmul.mubr.bf16.gmra.mrb[0].mxu0 %v368
      %v418 = vpop.f32.mrb[0].mxu0
      %v419 = vadd.f32 0.0, %v418
      %v420 = vpop.f32.mrb[0].mxu0
      %v421 = vpop.f32.mrb[0].mxu0
      %v422 = vadd.f32 0.0, %v421
      %v423 = vpop.f32.mrb[0].mxu0
      %424 = vmatprep.mubr.bf16.mxu0 0
      %425 = vmatmul.mubr.bf16.gmra.mrb[0].mxu0 %v371
      %v426 = vpop.f32.mrb[0].mxu0
      %v427 = vadd.f32 0.0, %v426
      %v428 = vpop.f32.mrb[0].mxu0
      %v429 = vpop.f32.mrb[0].mxu0
      %v430 = vadd.f32 0.0, %v429
      %v431 = vpop.f32.mrb[0].mxu0
      %432 = vmatprep.mubr.bf16.mxu0 0
      %433 = vmatmul.mubr.bf16.gmra.mrb[0].mxu0 %v374
      %v434 = vpop.f32.mrb[0].mxu0
      %v435 = vadd.f32 0.0, %v434
      %v436 = vpop.f32.mrb[0].mxu0
      %v437 = vpop.f32.mrb[0].mxu0
      %v438 = vadd.f32 0.0, %v437
      %v439 = vpop.f32.mrb[0].mxu0
      %440 = vdwg.mxu0
      %v441 = vpack.c.bf16 %v414, %v411
      %v442 = vpack.c.bf16 %v422, %v419
      %v443 = vpack.c.bf16 %v430, %v427
      %v444 = vpack.c.bf16 %v438, %v435
      %v449 = vunpack.c.l.b16 %v441
      %v450 = vunpack.c.h.b16 %v441
      %v451 = vunpack.c.l.b16 %v442
      %v452 = vunpack.c.h.b16 %v442
      %v453 = vunpack.c.l.b16 %v443
      %v454 = vunpack.c.h.b16 %v443
      %v455 = vunpack.c.l.b16 %v444
      %v456 = vunpack.c.h.b16 %v444
      %v457 = vpack.c.b16 %v449, %v449
      %v458 = vpack.c.b16 %v450, %v450
      %v459 = vpack.c.b16 %v451, %v451
      %v460 = vpack.c.b16 %v452, %v452
      %v461 = vpack.c.b16 %v453, %v453
      %v462 = vpack.c.b16 %v454, %v454
      %v463 = vpack.c.b16 %v455, %v455
      %v464 = vpack.c.b16 %v456, %v456
      %473 = vst [vmem:[%s298] sm:$0xf] %v457
      %474 = vst [vmem:[%s298 + $0x4] sm:$0xf] %v458
      %475 = vst [vmem:[%s298 + $0x8] sm:$0xf] %v459
      %476 = vst [vmem:[%s298 + $0xc] sm:$0xf] %v460
      %477 = vst [vmem:[%s298 + $0x10] sm:$0xf] %v461
      %478 = vst [vmem:[%s298 + $0x14] sm:$0xf] %v462
      %479 = vst [vmem:[%s298 + $0x18] sm:$0xf] %v463
      %480 = vst [vmem:[%s298 + $0x1c] sm:$0xf] %v464
      %v481 = vadd.f32 %v411, %v414
      %v482 = vadd.f32 %v481, %v419
      %v483 = vadd.f32 %v482, %v422
      %v484 = vadd.f32 %v483, %v427
      %v485 = vadd.f32 %v484, %v430
      %v486 = vadd.f32 %v485, %v435
      %v487 = vadd.f32 %v486, %v438
      %v488 = vrot.slane %v487, 4
      %v489 = vadd.f32 %v487, %v488
      %v490 = vrot.slane %v489, 2
      %v491 = vadd.f32 %v489, %v490
      %v492 = vrot.slane %v491, 1
      %v493 = vadd.f32 %v491, %v492
      %494 = vst [vmem:[%s308] sm:$0x1] %v493
      %v495 = vmul.f32 %v411, %v411
      %v496 = vmul.f32 %v414, %v414
      %v497 = vmul.f32 %v419, %v419
      %v498 = vmul.f32 %v422, %v422
      %v499 = vmul.f32 %v427, %v427
      %v500 = vmul.f32 %v430, %v430
      %v501 = vmul.f32 %v435, %v435
      %v502 = vmul.f32 %v438, %v438
      %v503 = vadd.f32 %v495, %v496
      %v504 = vadd.f32 %v503, %v497
      %v505 = vadd.f32 %v504, %v498
      %v506 = vadd.f32 %v505, %v499
      %v507 = vadd.f32 %v506, %v500
      %v508 = vadd.f32 %v507, %v501
      %v509 = vadd.f32 %v508, %v502
      %v510 = vrot.slane %v509, 4
      %v511 = vadd.f32 %v509, %v510
      %v512 = vrot.slane %v511, 2
      %v513 = vadd.f32 %v511, %v512
      %v514 = vrot.slane %v513, 1
      %v515 = vadd.f32 %v513, %v514
      %516 = vst [vmem:[%s317] sm:$0x1] %v515
      %s517 = smul.u32 8, %s22
      %p518 = scmp.lt.s32.totalorder %s21, 1
      %s519 = scalar_select %p518, %s21, 1
      %p520 = scmp.lt.s32.totalorder %s517, 7
      %s521 = scalar_select %p520, %s517, 7
      %p522 = scmp.lt.s32.totalorder %s23, 0
      %s523 = scalar_select %p522, %s23, 0
      %s524 = sadd.s32 %s523, %s521
      %s525 = smul.addr %s519, 8
      %s526 = sadd.s32 %s524, %s525
      %s527 = smul.addr %s526, 4
      %s528 = scalar_lea.vmem %s2, %s527
      %p529 = scmp.lt.s32.totalorder %s21, 1
      %s530 = scalar_select %p529, %s21, 1
      %p531 = scmp.lt.s32.totalorder %s22, 0
      %s532 = scalar_select %p531, %s22, 0
      %p533 = scmp.lt.s32.totalorder %s23, 0
      %s534 = scalar_select %p533, %s23, 0
      %s535 = sadd.s32 %s534, %s532
      %s536 = sadd.s32 %s535, %s530
      %s537 = scalar_lea.vmem %s3, %s536
      %p538 = scmp.lt.s32.totalorder %s21, 1
      %s539 = scalar_select %p538, %s21, 1
      %p540 = scmp.lt.s32.totalorder %s22, 0
      %s541 = scalar_select %p540, %s22, 0
      %p542 = scmp.lt.s32.totalorder %s23, 0
      %s543 = scalar_select %p542, %s23, 0
      %s544 = sadd.s32 %s543, %s541
      %s545 = sadd.s32 %s544, %s539
      %s546 = scalar_lea.vmem %s4, %s545
      // Predicated region
      $region29: #{_lambda_.2} parent=27 // pred_check
        %p547 = pneg %p111
      $region30: #{_lambda_.2} parent=27 // pred_check_branch
        %549 = sbr.rel (%p547) target = $region32
      $region31: #{_lambda_.2} parent=27 // pred_region
        %s550 = smul.u32 8, %s22
      $region32: #{_lambda_.2} parent=27 // pred_fallthru
        _
      // Predicated region
      $region33: #{_lambda_.2} parent=27 // pred_check
        %p551 = pneg %p141
      $region34: #{_lambda_.2} parent=27 // pred_check_branch
        %553 = sbr.rel (%p551) target = $region36
      $region35: #{_lambda_.2} parent=27 // pred_region
        _
      $region36: #{_lambda_.2} parent=27 // pred_fallthru
        _
      // Predicated region
      $region37: #{_lambda_.2} parent=27 // pred_check
        %p554 = pneg %p171
      $region38: #{_lambda_.2} parent=27 // pred_check_branch
        %556 = sbr.rel (%p554) target = $region40
      $region39: #{_lambda_.2} parent=27 // pred_region
        _
      $region40: #{_lambda_.2} parent=27 // pred_fallthru
        _
    $region28: #{_lambda_.2} parent=5 // pred_fallthru
      _
    %p557 = scmp.le.s32.totalorder 2, %s11
    // Predicated region
    $region41: #{_lambda_.2} parent=5 // pred_check
      %p558 = pneg %p557
    $region42: #{_lambda_.2} parent=5 // pred_check_branch
      %560 = sbr.rel (%p558) target = $region44
    $region43: #{_lambda_.2} parent=5 // pred_region
      %s561 = ssub.s32 %s11, 2
      // Predicated region
      $region45: #{_lambda_.2} parent=43 // pred_check
        %p562 = pneg %p117
      $region46: #{_lambda_.2} parent=43 // pred_check_branch
        %564 = sbr.rel (%p562) target = $region48
      $region47: #{_lambda_.2} parent=43 // pred_region
        %s565 = smul.u32 8, %s25
        %p566 = scmp.lt.s32.totalorder %s24, 1
        %s567 = scalar_select %p566, %s24, 1
        %p568 = scmp.lt.s32.totalorder %s565, 7
        %s569 = scalar_select %p568, %s565, 7
        %p570 = scmp.lt.s32.totalorder %s26, 0
        %s571 = scalar_select %p570, %s26, 0
        %s572 = sadd.s32 %s571, %s569
        %s573 = smul.addr %s567, 8
        %s574 = sadd.s32 %s572, %s573
        %s575 = smul.addr %s574, 4
        %s576 = scalar_lea.vmem %s2, %s575
      $region48: #{_lambda_.2} parent=43 // pred_fallthru
        _
      // Predicated region
      $region49: #{_lambda_.2} parent=43 // pred_check
        %p577 = pneg %p147
      $region50: #{_lambda_.2} parent=43 // pred_check_branch
        %579 = sbr.rel (%p577) target = $region52
      $region51: #{_lambda_.2} parent=43 // pred_region
        %p580 = scmp.lt.s32.totalorder %s24, 1
        %s581 = scalar_select %p580, %s24, 1
        %p582 = scmp.lt.s32.totalorder %s25, 0
        %s583 = scalar_select %p582, %s25, 0
        %p584 = scmp.lt.s32.totalorder %s26, 0
        %s585 = scalar_select %p584, %s26, 0
        %s586 = sadd.s32 %s585, %s583
        %s587 = sadd.s32 %s586, %s581
        %s588 = scalar_lea.vmem %s3, %s587
      $region52: #{_lambda_.2} parent=43 // pred_fallthru
        _
      // Predicated region
      $region53: #{_lambda_.2} parent=43 // pred_check
        %p589 = pneg %p177
      $region54: #{_lambda_.2} parent=43 // pred_check_branch
        %591 = sbr.rel (%p589) target = $region56
      $region55: #{_lambda_.2} parent=43 // pred_region
        %p592 = scmp.lt.s32.totalorder %s24, 1
        %s593 = scalar_select %p592, %s24, 1
        %p594 = scmp.lt.s32.totalorder %s25, 0
        %s595 = scalar_select %p594, %s25, 0
        %p596 = scmp.lt.s32.totalorder %s26, 0
        %s597 = scalar_select %p596, %s26, 0
        %s598 = sadd.s32 %s597, %s595
        %s599 = sadd.s32 %s598, %s593
        %s600 = scalar_lea.vmem %s4, %s599
      $region56: #{_lambda_.2} parent=43 // pred_fallthru
        _
    $region44: #{_lambda_.2} parent=5 // pred_fallthru
      _
  $region6: #{_lambda_.2} parent=0 // loop_footer
    %s15 = sadd.s32 1, %s11
  $region7: #{_lambda_.2} parent=0 // loop_footer_branch
    %10 = sbr.rel target = $region3
  $region8: #{_lambda_.2} parent=0 // loop_exit
    _

</llo_original>
